<compile_context>
chip_gen: v7x
topology: tpu7x:2x2x1
jax: 0.10.0
libtpu: 0.0.40
codegen_flags: <defaults>
</compile_context>

<pallas_src>
import functools

import jax
import jax.numpy as jnp
from jax.experimental import pallas as pl
from jax.experimental.pallas import tpu as pltpu


def _hardswish(x):
    # PyTorch Hardswish: x * clamp(x + 3, 0, 6) / 6
    return x * jnp.clip(x + 3.0, 0.0, 6.0) * (1.0 / 6.0)


def densenet_kernel(x1_ref, w13_ref, b1_ref, w2b_ref, b2_ref, out_ref):
    x1 = x1_ref[...]                                   # (tm, D)
    D = x1.shape[-1]

    # One MXU pass for x1:  t = x1 @ [w1 | w2a]  -> (tm, 3D), f32 accumulate.
    t = jnp.dot(x1, w13_ref[...], preferred_element_type=jnp.float32)

    # dense1: Linear(D -> D) + Hardswish
    h1 = _hardswish(t[:, :D] + b1_ref[...])            # (tm, D) f32
    h1_lo = h1.astype(x1.dtype)                        # single down-cast: store + dot2

    # dense2 on the virtual concat [x1, h1]:  x2 @ w2 = x1 @ w2a + h1 @ w2b
    h2 = t[:, D:] + jnp.dot(h1_lo, w2b_ref[...],
                            preferred_element_type=jnp.float32)
    h2 = _hardswish(h2 + b2_ref[...])                  # (tm, 2D) f32

    # Fused output x3 = [x1 | h1 | h2] written as column sub-stores
    # (unmasked lane-aligned vst whenever D % 128 == 0).
    out_ref[:, :D] = x1.astype(out_ref.dtype)
    out_ref[:, D:2 * D] = h1_lo.astype(out_ref.dtype)
    out_ref[:, 2 * D:] = h2.astype(out_ref.dtype)


def _round_up(x, m):
    return ((x + m - 1) // m) * m


def _vmem_capacity_bytes():
    try:
        return int(pltpu.get_tpu_info().vmem_capacity_bytes)
    except Exception:
        return 64 * 1024 * 1024  # conservative: v7x per-TC VMEM


@functools.partial(jax.jit, static_argnames=("block_rows", "single_buffer_weights"))
def densenet_forward(x1, w1, b1, w2, b2, *, block_rows=512,
                     single_buffer_weights=True):
    """x1: (B, D); w1: (D, D); b1: (D,); w2: (2D, 2D); b2: (2D,).
    Weights use (in, out) layout, i.e. PyTorch weight.T.
    Returns x3 = concat([x1, h1, h2], axis=1), shape (B, 4D)."""
    B, D = x1.shape
    dt = x1.dtype
    itemsize = jnp.dtype(dt).itemsize

    # ---- weight prep (once, under jit) ------------------------------------
    # Merge w1 with the x1-facing half of w2 so the kernel does ONE x1 matmul;
    # keep the h1-facing half separate (no lane concats in the kernel).
    # TODO(synk): for very large D (resident weights > VMEM) also tile over D.
    w13 = jnp.concatenate((w1, w2[:D]), axis=1)        # (D, 3D)
    w2b = w2[D:]                                       # (D, 2D)
    b1_2d = b1.reshape(1, D)
    b2_2d = b2.reshape(1, 2 * D)

    # ---- tile / VMEM budgeting (generation-aware) --------------------------
    vmem_cap = _vmem_capacity_bytes()
    weight_bytes = (5 * D * D + 3 * D) * itemsize      # w13 + w2b + b1 + b2 (1 buffer)
    per_row = 5 * D * itemsize                         # x1 row (D) + fused out row (4D)
    act_budget = int(0.70 * vmem_cap) - weight_bytes
    max_rows = max(8, (act_budget // (2 * per_row)) // 8 * 8) if act_budget > 0 else 8

    if B <= 8:
        tm = B                                         # full-batch block (always legal)
    else:
        tm = _round_up(pl.cdiv(B, 4), 8)               # aim for >= 4 grid steps
        tm = max(8, min(tm, block_rows, max_rows, _round_up(B, 8)))
    grid = (pl.cdiv(B, tm),)

    needed = weight_bytes * (1 if single_buffer_weights else 2) \
        + 2 * _round_up(tm, 8) * per_row               # double-buffered activations
    vmem_limit = min(int(0.90 * vmem_cap), max(needed + (8 << 20), 16 << 20))

    resident = lambda i: (0, 0)    # weights / biases: same block every step
    rowtile = lambda i: (i, 0)     # activations / output: tiled over batch
    w_mode = pl.Buffered(1) if single_buffer_weights else None

    cost = pl.CostEstimate(
        flops=10 * B * D * D,
        transcendentals=0,
        bytes_accessed=(5 * B * D + 5 * D * D + 3 * D) * itemsize,
    )

    return pl.pallas_call(
        densenet_kernel,
        out_shape=jax.ShapeDtypeStruct((B, 4 * D), dt),
        grid=grid,
        in_specs=[
            pl.BlockSpec((tm, D), rowtile),                             # x1
            pl.BlockSpec((D, 3 * D), resident, pipeline_mode=w_mode),   # [w1 | w2a]
            pl.BlockSpec((1, D), resident, pipeline_mode=w_mode),       # b1
            pl.BlockSpec((D, 2 * D), resident, pipeline_mode=w_mode),   # w2b
            pl.BlockSpec((1, 2 * D), resident, pipeline_mode=w_mode),   # b2
        ],
        out_specs=pl.BlockSpec((tm, 4 * D), rowtile),                   # [x1|h1|h2]
        compiler_params=pltpu.CompilerParams(
            dimension_semantics=("parallel",),
            vmem_limit_bytes=vmem_limit,
        ),
        cost_estimate=cost,
    )(x1, w13, b1_2d, w2b, b2_2d)


def densenet_reference(x1, w1, b1, w2, b2):
    h1 = _hardswish(x1 @ w1 + b1)
    x2 = jnp.concatenate((x1, h1), axis=1)
    h2 = _hardswish(x2 @ w2 + b2)
    return jnp.concatenate((x2, h2), axis=1)


def init_params(key, lay_dim, dtype=jnp.float32):
    """Deterministic init mirroring nn.Linear's U(-1/sqrt(fan_in), 1/sqrt(fan_in))."""
    k1, k2, k3, k4 = jax.random.split(key, 4)
    d1, d2 = lay_dim, 2 * lay_dim
    bnd1 = 1.0 / jnp.sqrt(d1)
    bnd2 = 1.0 / jnp.sqrt(d2)
    # stored as (in_features, out_features) == torch weight.T
    w1 = jax.random.uniform(k1, (d1, d1), dtype, -bnd1, bnd1)
    b1 = jax.random.uniform(k2, (d1,), dtype, -bnd1, bnd1)
    w2 = jax.random.uniform(k3, (d2, d2), dtype, -bnd2, bnd2)
    b2 = jax.random.uniform(k4, (d2,), dtype, -bnd2, bnd2)
    return w1, b1, w2, b2


if __name__ == "__main__":
    key = jax.random.PRNGKey(0)
    kx, kp = jax.random.split(key)

    B, lay_dim = 2, 32
    x1 = jax.random.normal(kx, (B, lay_dim), jnp.float32)
    w1, b1, w2, b2 = init_params(kp, lay_dim)

    try:
        out = densenet_forward(x1, w1, b1, w2, b2)
    except Exception:
        # Fallback: if this jax build rejects single-buffered resident inputs,
        # retry with default double-buffered weights (same semantics).
        out = densenet_forward(x1, w1, b1, w2, b2, single_buffer_weights=False)
    out = jax.block_until_ready(out)

    ref = densenet_reference(x1, w1, b1, w2, b2)
    assert out.shape == (B, 4 * lay_dim)
    assert jnp.allclose(out, ref, atol=1e-5, rtol=1e-5), "mismatch vs reference"

    print("KERNEL_OK")
</pallas_src>

<mosaic_0001>
module attributes {stable_mosaic.version = 11 : i64} {
  func.func @densenet_kernel(%arg0: i32, %arg1: memref<2x32xf32, #tpu.memory_space<vmem>>, %arg2: memref<32x96xf32, #tpu.memory_space<vmem>>, %arg3: memref<1x32xf32, #tpu.memory_space<vmem>>, %arg4: memref<32x64xf32, #tpu.memory_space<vmem>>, %arg5: memref<1x64xf32, #tpu.memory_space<vmem>>, %arg6: memref<2x128xf32, #tpu.memory_space<vmem>>) attributes {dimension_semantics = [#tpu.dimension_semantics<parallel>], iteration_bounds = array<i64: 1>, scalar_prefetch = 0 : i64, scratch_operands = 0 : i64, tpu.core_type = #tpu.core_type<tc>, window_params = [{transform_indices = @transform_0, window_bounds = array<i64: 2, 32>}, {pipeline_mode = #tpu.pipeline_mode<synchronous>, transform_indices = @transform_1, window_bounds = array<i64: 32, 96>}, {pipeline_mode = #tpu.pipeline_mode<synchronous>, transform_indices = @transform_2, window_bounds = array<i64: 1, 32>}, {pipeline_mode = #tpu.pipeline_mode<synchronous>, transform_indices = @transform_3, window_bounds = array<i64: 32, 64>}, {pipeline_mode = #tpu.pipeline_mode<synchronous>, transform_indices = @transform_4, window_bounds = array<i64: 1, 64>}, {transform_indices = @transform_5, window_bounds = array<i64: 2, 128>}]} {
    %c0 = arith.constant 0 : index
    %c0_0 = arith.constant 0 : index
    %0 = vector.load %arg1[%c0, %c0_0] : memref<2x32xf32, #tpu.memory_space<vmem>>, vector<2x32xf32>
    %c0_1 = arith.constant 0 : index
    %c0_2 = arith.constant 0 : index
    %1 = vector.load %arg2[%c0_1, %c0_2] : memref<32x96xf32, #tpu.memory_space<vmem>>, vector<32x96xf32>
    %cst = arith.constant dense<0.000000e+00> : vector<2x96xf32>
    %2 = tpu.matmul %0, %1, %cst {dimension_numbers = #tpu.dot_dimension_numbers<[1], [0], [0], [1], [0, 0, 1, 1], [], []>} : vector<2x32xf32>, vector<32x96xf32>, vector<2x96xf32> -> vector<2x96xf32>
    %3 = vector.extract_strided_slice %2 {offsets = [0, 0], sizes = [2, 32], strides = [1, 1]} : vector<2x96xf32> to vector<2x32xf32>
    %c0_3 = arith.constant 0 : index
    %c0_4 = arith.constant 0 : index
    %4 = vector.load %arg3[%c0_3, %c0_4] : memref<1x32xf32, #tpu.memory_space<vmem>>, vector<1x32xf32>
    %5 = vector.broadcast %4 : vector<1x32xf32> to vector<2x32xf32>
    %6 = arith.addf %3, %5 : vector<2x32xf32>
    %cst_5 = arith.constant 3.000000e+00 : f32
    %7 = vector.broadcast %cst_5 : f32 to vector<2x32xf32>
    %8 = arith.addf %6, %7 : vector<2x32xf32>
    %cst_6 = arith.constant 0.000000e+00 : f32
    %cst_7 = arith.constant 6.000000e+00 : f32
    %9 = vector.broadcast %cst_6 : f32 to vector<2x32xf32>
    %10 = arith.maximumf %9, %8 : vector<2x32xf32>
    %11 = vector.broadcast %cst_7 : f32 to vector<2x32xf32>
    %12 = arith.minimumf %11, %10 : vector<2x32xf32>
    %13 = arith.mulf %6, %12 : vector<2x32xf32>
    %cst_8 = arith.constant 0.166666672 : f32
    %14 = vector.broadcast %cst_8 : f32 to vector<2x32xf32>
    %15 = arith.mulf %13, %14 : vector<2x32xf32>
    %16 = vector.extract_strided_slice %2 {offsets = [0, 32], sizes = [2, 64], strides = [1, 1]} : vector<2x96xf32> to vector<2x64xf32>
    %c0_9 = arith.constant 0 : index
    %c0_10 = arith.constant 0 : index
    %17 = vector.load %arg4[%c0_9, %c0_10] : memref<32x64xf32, #tpu.memory_space<vmem>>, vector<32x64xf32>
    %cst_11 = arith.constant dense<0.000000e+00> : vector<2x64xf32>
    %18 = tpu.matmul %15, %17, %cst_11 {dimension_numbers = #tpu.dot_dimension_numbers<[1], [0], [0], [1], [0, 0, 1, 1], [], []>} : vector<2x32xf32>, vector<32x64xf32>, vector<2x64xf32> -> vector<2x64xf32>
    %19 = arith.addf %16, %18 : vector<2x64xf32>
    %c0_12 = arith.constant 0 : index
    %c0_13 = arith.constant 0 : index
    %20 = vector.load %arg5[%c0_12, %c0_13] : memref<1x64xf32, #tpu.memory_space<vmem>>, vector<1x64xf32>
    %21 = vector.broadcast %20 : vector<1x64xf32> to vector<2x64xf32>
    %22 = arith.addf %19, %21 : vector<2x64xf32>
    %cst_14 = arith.constant 3.000000e+00 : f32
    %23 = vector.broadcast %cst_14 : f32 to vector<2x64xf32>
    %24 = arith.addf %22, %23 : vector<2x64xf32>
    %cst_15 = arith.constant 0.000000e+00 : f32
    %cst_16 = arith.constant 6.000000e+00 : f32
    %25 = vector.broadcast %cst_15 : f32 to vector<2x64xf32>
    %26 = arith.maximumf %25, %24 : vector<2x64xf32>
    %27 = vector.broadcast %cst_16 : f32 to vector<2x64xf32>
    %28 = arith.minimumf %27, %26 : vector<2x64xf32>
    %29 = arith.mulf %22, %28 : vector<2x64xf32>
    %cst_17 = arith.constant 0.166666672 : f32
    %30 = vector.broadcast %cst_17 : f32 to vector<2x64xf32>
    %31 = arith.mulf %29, %30 : vector<2x64xf32>
    %c0_18 = arith.constant 0 : index
    %c0_19 = arith.constant 0 : index
    %32 = vector.load %arg6[%c0_18, %c0_19] : memref<2x128xf32, #tpu.memory_space<vmem>>, vector<2x32xf32>
    tpu.vector_store %arg6[%c0_18, %c0_19], %0 {strides = array<i32>} : memref<2x128xf32, #tpu.memory_space<vmem>>, vector<2x32xf32>,
    %c0_20 = arith.constant 0 : index
    %c32 = arith.constant 32 : index
    %33 = vector.load %arg6[%c0_20, %c32] : memref<2x128xf32, #tpu.memory_space<vmem>>, vector<2x32xf32>
    tpu.vector_store %arg6[%c0_20, %c32], %15 {strides = array<i32>} : memref<2x128xf32, #tpu.memory_space<vmem>>, vector<2x32xf32>,
    %c0_21 = arith.constant 0 : index
    %c64 = arith.constant 64 : index
    %34 = vector.load %arg6[%c0_21, %c64] : memref<2x128xf32, #tpu.memory_space<vmem>>, vector<2x64xf32>
    tpu.vector_store %arg6[%c0_21, %c64], %31 {strides = array<i32>} : memref<2x128xf32, #tpu.memory_space<vmem>>, vector<2x64xf32>,
    return
  }
  func.func @transform_0(%arg0: i32) -> (i32, i32) {
    %c0_i32 = arith.constant 0 : i32
    %c0_i32_0 = arith.constant 0 : i32
    return %arg0, %c0_i32 : i32, i32
  }
  func.func @transform_1(%arg0: i32) -> (i32, i32) {
    %c0_i32 = arith.constant 0 : i32
    %c0_i32_0 = arith.constant 0 : i32
    %c0_i32_1 = arith.constant 0 : i32
    return %c0_i32, %c0_i32_0 : i32, i32
  }
  func.func @transform_2(%arg0: i32) -> (i32, i32) {
    %c0_i32 = arith.constant 0 : i32
    %c0_i32_0 = arith.constant 0 : i32
    %c0_i32_1 = arith.constant 0 : i32
    return %c0_i32, %c0_i32_0 : i32, i32
  }
  func.func @transform_3(%arg0: i32) -> (i32, i32) {
    %c0_i32 = arith.constant 0 : i32
    %c0_i32_0 = arith.constant 0 : i32
    %c0_i32_1 = arith.constant 0 : i32
    return %c0_i32, %c0_i32_0 : i32, i32
  }
  func.func @transform_4(%arg0: i32) -> (i32, i32) {
    %c0_i32 = arith.constant 0 : i32
    %c0_i32_0 = arith.constant 0 : i32
    %c0_i32_1 = arith.constant 0 : i32
    return %c0_i32, %c0_i32_0 : i32, i32
  }
  func.func @transform_5(%arg0: i32) -> (i32, i32) {
    %c0_i32 = arith.constant 0 : i32
    %c0_i32_0 = arith.constant 0 : i32
    return %arg0, %c0_i32 : i32, i32
  }
}

module attributes {stable_mosaic.version = 11 : i64} {
  func.func @densenet_kernel(%arg0: i32, %arg1: memref<2x32xf32, #tpu.memory_space<vmem>>, %arg2: memref<32x96xf32, #tpu.memory_space<vmem>>, %arg3: memref<1x32xf32, #tpu.memory_space<vmem>>, %arg4: memref<32x64xf32, #tpu.memory_space<vmem>>, %arg5: memref<1x64xf32, #tpu.memory_space<vmem>>, %arg6: memref<2x128xf32, #tpu.memory_space<vmem>>) attributes {dimension_semantics = [#tpu.dimension_semantics<parallel>], iteration_bounds = array<i64: 1>, scalar_prefetch = 0 : i64, scratch_operands = 0 : i64, tpu.core_type = #tpu.core_type<tc>, window_params = [{transform_indices = @transform_0, window_bounds = array<i64: 2, 32>}, {pipeline_mode = #tpu.pipeline_mode<synchronous>, transform_indices = @transform_1, window_bounds = array<i64: 32, 96>}, {pipeline_mode = #tpu.pipeline_mode<synchronous>, transform_indices = @transform_2, window_bounds = array<i64: 1, 32>}, {pipeline_mode = #tpu.pipeline_mode<synchronous>, transform_indices = @transform_3, window_bounds = array<i64: 32, 64>}, {pipeline_mode = #tpu.pipeline_mode<synchronous>, transform_indices = @transform_4, window_bounds = array<i64: 1, 64>}, {transform_indices = @transform_5, window_bounds = array<i64: 2, 128>}]} {
    %c0 = arith.constant 0 : index
    %c0_0 = arith.constant 0 : index
    %0 = vector.load %arg1[%c0, %c0_0] : memref<2x32xf32, #tpu.memory_space<vmem>>, vector<2x32xf32>
    %c0_1 = arith.constant 0 : index
    %c0_2 = arith.constant 0 : index
    %1 = vector.load %arg2[%c0_1, %c0_2] : memref<32x96xf32, #tpu.memory_space<vmem>>, vector<32x96xf32>
    %cst = arith.constant dense<0.000000e+00> : vector<2x96xf32>
    %2 = tpu.matmul %0, %1, %cst {dimension_numbers = #tpu.dot_dimension_numbers<[1], [0], [0], [1], [0, 0, 1, 1], [], []>} : vector<2x32xf32>, vector<32x96xf32>, vector<2x96xf32> -> vector<2x96xf32>
    %3 = vector.extract_strided_slice %2 {offsets = [0, 0], sizes = [2, 32], strides = [1, 1]} : vector<2x96xf32> to vector<2x32xf32>
    %c0_3 = arith.constant 0 : index
    %c0_4 = arith.constant 0 : index
    %4 = vector.load %arg3[%c0_3, %c0_4] : memref<1x32xf32, #tpu.memory_space<vmem>>, vector<1x32xf32>
    %5 = vector.broadcast %4 : vector<1x32xf32> to vector<2x32xf32>
    %6 = arith.addf %3, %5 : vector<2x32xf32>
    %cst_5 = arith.constant 3.000000e+00 : f32
    %7 = vector.broadcast %cst_5 : f32 to vector<2x32xf32>
    %8 = arith.addf %6, %7 : vector<2x32xf32>
    %cst_6 = arith.constant 0.000000e+00 : f32
    %cst_7 = arith.constant 6.000000e+00 : f32
    %9 = vector.broadcast %cst_6 : f32 to vector<2x32xf32>
    %10 = arith.maximumf %9, %8 : vector<2x32xf32>
    %11 = vector.broadcast %cst_7 : f32 to vector<2x32xf32>
    %12 = arith.minimumf %11, %10 : vector<2x32xf32>
    %13 = arith.mulf %6, %12 : vector<2x32xf32>
    %cst_8 = arith.constant 0.166666672 : f32
    %14 = vector.broadcast %cst_8 : f32 to vector<2x32xf32>
    %15 = arith.mulf %13, %14 : vector<2x32xf32>
    %16 = vector.extract_strided_slice %2 {offsets = [0, 32], sizes = [2, 64], strides = [1, 1]} : vector<2x96xf32> to vector<2x64xf32>
    %c0_9 = arith.constant 0 : index
    %c0_10 = arith.constant 0 : index
    %17 = vector.load %arg4[%c0_9, %c0_10] : memref<32x64xf32, #tpu.memory_space<vmem>>, vector<32x64xf32>
    %cst_11 = arith.constant dense<0.000000e+00> : vector<2x64xf32>
    %18 = tpu.matmul %15, %17, %cst_11 {dimension_numbers = #tpu.dot_dimension_numbers<[1], [0], [0], [1], [0, 0, 1, 1], [], []>} : vector<2x32xf32>, vector<32x64xf32>, vector<2x64xf32> -> vector<2x64xf32>
    %19 = arith.addf %16, %18 : vector<2x64xf32>
    %c0_12 = arith.constant 0 : index
    %c0_13 = arith.constant 0 : index
    %20 = vector.load %arg5[%c0_12, %c0_13] : memref<1x64xf32, #tpu.memory_space<vmem>>, vector<1x64xf32>
    %21 = vector.broadcast %20 : vector<1x64xf32> to vector<2x64xf32>
    %22 = arith.addf %19, %21 : vector<2x64xf32>
    %cst_14 = arith.constant 3.000000e+00 : f32
    %23 = vector.broadcast %cst_14 : f32 to vector<2x64xf32>
    %24 = arith.addf %22, %23 : vector<2x64xf32>
    %cst_15 = arith.constant 0.000000e+00 : f32
    %cst_16 = arith.constant 6.000000e+00 : f32
    %25 = vector.broadcast %cst_15 : f32 to vector<2x64xf32>
    %26 = arith.maximumf %25, %24 : vector<2x64xf32>
    %27 = vector.broadcast %cst_16 : f32 to vector<2x64xf32>
    %28 = arith.minimumf %27, %26 : vector<2x64xf32>
    %29 = arith.mulf %22, %28 : vector<2x64xf32>
    %cst_17 = arith.constant 0.166666672 : f32
    %30 = vector.broadcast %cst_17 : f32 to vector<2x64xf32>
    %31 = arith.mulf %29, %30 : vector<2x64xf32>
    %c0_18 = arith.constant 0 : index
    %c0_19 = arith.constant 0 : index
    %32 = vector.load %arg6[%c0_18, %c0_19] : memref<2x128xf32, #tpu.memory_space<vmem>>, vector<2x32xf32>
    tpu.vector_store %arg6[%c0_18, %c0_19], %0 {strides = array<i32>} : memref<2x128xf32, #tpu.memory_space<vmem>>, vector<2x32xf32>,
    %c0_20 = arith.constant 0 : index
    %c32 = arith.constant 32 : index
    %33 = vector.load %arg6[%c0_20, %c32] : memref<2x128xf32, #tpu.memory_space<vmem>>, vector<2x32xf32>
    tpu.vector_store %arg6[%c0_20, %c32], %15 {strides = array<i32>} : memref<2x128xf32, #tpu.memory_space<vmem>>, vector<2x32xf32>,
    %c0_21 = arith.constant 0 : index
    %c64 = arith.constant 64 : index
    %34 = vector.load %arg6[%c0_21, %c64] : memref<2x128xf32, #tpu.memory_space<vmem>>, vector<2x64xf32>
    tpu.vector_store %arg6[%c0_21, %c64], %31 {strides = array<i32>} : memref<2x128xf32, #tpu.memory_space<vmem>>, vector<2x64xf32>,
    return
  }
  func.func @transform_0(%arg0: i32) -> (i32, i32) {
    %c0_i32 = arith.constant 0 : i32
    %c0_i32_0 = arith.constant 0 : i32
    return %arg0, %c0_i32 : i32, i32
  }
  func.func @transform_1(%arg0: i32) -> (i32, i32) {
    %c0_i32 = arith.constant 0 : i32
    %c0_i32_0 = arith.constant 0 : i32
    %c0_i32_1 = arith.constant 0 : i32
    return %c0_i32, %c0_i32_0 : i32, i32
  }
  func.func @transform_2(%arg0: i32) -> (i32, i32) {
    %c0_i32 = arith.constant 0 : i32
    %c0_i32_0 = arith.constant 0 : i32
    %c0_i32_1 = arith.constant 0 : i32
    return %c0_i32, %c0_i32_0 : i32, i32
  }
  func.func @transform_3(%arg0: i32) -> (i32, i32) {
    %c0_i32 = arith.constant 0 : i32
    %c0_i32_0 = arith.constant 0 : i32
    %c0_i32_1 = arith.constant 0 : i32
    return %c0_i32, %c0_i32_0 : i32, i32
  }
  func.func @transform_4(%arg0: i32) -> (i32, i32) {
    %c0_i32 = arith.constant 0 : i32
    %c0_i32_0 = arith.constant 0 : i32
    %c0_i32_1 = arith.constant 0 : i32
    return %c0_i32, %c0_i32_0 : i32, i32
  }
  func.func @transform_5(%arg0: i32) -> (i32, i32) {
    %c0_i32 = arith.constant 0 : i32
    %c0_i32_0 = arith.constant 0 : i32
    return %arg0, %c0_i32 : i32, i32
  }
}

</mosaic_0001>

<llo_original>
// kernel: densenet_forward.1
$region0: #{densenet_forward.1}
  #allocation0 [shape = 'u32[]', space=smem, size = 0x4, offset = 0x4, fixed_abs, tag = 'smem constant byte address 0x4 - core index']
  #allocation1 [shape = 'u32[144,128]{1,0:T(1,128)}', space=vmem, size = 0x12000, scoped, tag = 'internal scratch']
  %s0 = inlined_call_operand.vmem [shape: f32[2,32], index: 0, kind: input, shape index: {}]
  %s1 = inlined_call_operand.vmem [shape: f32[32,96], index: 1, kind: input, shape index: {}]
  %s2 = inlined_call_operand.vmem [shape: f32[1,32], index: 2, kind: input, shape index: {}]
  %s3 = inlined_call_operand.vmem [shape: f32[32,64], index: 3, kind: input, shape index: {}]
  %s4 = inlined_call_operand.vmem [shape: f32[1,64], index: 4, kind: input, shape index: {}]
  %s5 = inlined_call_operand.hbm [shape: f32[2,128], index: 5, kind: output, shape index: {}]
  %s6 = sld [smem:[#allocation0]]
  $region30: #{densenet_forward.1} parent=0
    _
  %s8 = ssub.s32 1, %s6
  %s9 = scalar_select 0, %s8, %s6
  $region1: #{densenet_forward.1} parent=0
    #allocation2 [shape = 'u8[1024]{0}', space=vmem, size = 0x400, scoped, tag = 'output window, operand 0, single buffered']
    #allocation3 [shape = 's32[1]{0}', space=sflag, size = 0x4, scoped, tag = 'scoped memory for densenet_forward.1']
    %10 = vsyncpa [#allocation3], 0
    // Predicated region
    $region2: #{densenet_forward.1} parent=1 // pred_check
      _
    $region3: #{densenet_forward.1} parent=1 // pred_check_branch
      %12 = sbr.rel (0) target = $region5
    $region4: #{densenet_forward.1} parent=1 // pred_region
      _
    $region5: #{densenet_forward.1} parent=1 // pred_fallthru
      _
    // Predicated region
    $region6: #{densenet_forward.1} parent=1 // pred_check
      _
    $region7: #{densenet_forward.1} parent=1 // pred_check_branch
      %14 = sbr.rel (0) target = $region9
    $region8: #{densenet_forward.1} parent=1 // pred_region
      _
    $region9: #{densenet_forward.1} parent=1 // pred_fallthru
      _
    // Predicated region
    $region10: #{densenet_forward.1} parent=1 // pred_check
      _
    $region11: #{densenet_forward.1} parent=1 // pred_check_branch
      %16 = sbr.rel (0) target = $region13
    $region12: #{densenet_forward.1} parent=1 // pred_region
      _
    $region13: #{densenet_forward.1} parent=1 // pred_fallthru
      _
    // Predicated region
    $region14: #{densenet_forward.1} parent=1 // pred_check
      _
    $region15: #{densenet_forward.1} parent=1 // pred_check_branch
      %18 = sbr.rel (0) target = $region17
    $region16: #{densenet_forward.1} parent=1 // pred_region
      _
    $region17: #{densenet_forward.1} parent=1 // pred_fallthru
      _
    // Predicated region
    $region18: #{densenet_forward.1} parent=1 // pred_check
      _
    $region19: #{densenet_forward.1} parent=1 // pred_check_branch
      %20 = sbr.rel (0) target = $region21
    $region20: #{densenet_forward.1} parent=1 // pred_region
      _
    $region21: #{densenet_forward.1} parent=1 // pred_fallthru
      _
    %v21 = vld [vmem:[%s0] sm:$0x3]
    %v22 = vld [vmem:[%s1] sm:$0xff]
    %v23 = vld [vmem:[%s1 + $0x8] sm:$0xff]
    %v24 = vld [vmem:[%s1 + $0x10] sm:$0xff]
    %v25 = vld [vmem:[%s1 + $0x18] sm:$0xff]
    %vm26 = vcmask 261120
    %v28 = vsel %vm26, %v21, 0
    %30 = vmatprep.subr.mxu0 0.0
    %31 = vmatpush1.msra.mxu0 %v22
    %32 = vmatprep.subr.mxu0 0.0
    %33 = vmatpush1.msra.mxu0 %v23
    %34 = vmatprep.subr.mxu0 0.0
    %35 = vmatpush1.msra.mxu0 %v24
    %36 = vmatprep.subr.mxu0 0.0
    %37 = vmatpush1.msra.mxu0 %v25
    %38 = vmatprep.subr.mxu0 0.0
    %39 = vmatpush1.msra.mxu0 0.0
    %40 = vmatprep.subr.mxu0 0.0
    %41 = vmatpush1.msra.mxu0 0.0
    %42 = vmatprep.subr.mxu0 0.0
    %43 = vmatpush1.msra.mxu0 0.0
    %44 = vmatprep.subr.mxu0 0.0
    %45 = vmatpush1.msra.mxu0 0.0
    %46 = vmatprep.subr.mxu0 0.0
    %47 = vmatpush1.msra.mxu0 0.0
    %48 = vmatprep.subr.mxu0 0.0
    %49 = vmatpush1.msra.mxu0 0.0
    %50 = vmatprep.subr.mxu0 0.0
    %51 = vmatpush1.msra.mxu0 0.0
    %52 = vmatprep.subr.mxu0 0.0
    %53 = vmatpush1.msra.mxu0 0.0
    %54 = vmatprep.subr.mxu0 0.0
    %55 = vmatpush1.msra.mxu0 0.0
    %56 = vmatprep.subr.mxu0 0.0
    %57 = vmatpush1.msra.mxu0 0.0
    %58 = vmatprep.subr.mxu0 0.0
    %59 = vmatpush1.msra.mxu0 0.0
    %60 = vmatprep.subr.mxu0 0.0
    %61 = vmatpush1.msra.mxu0 0.0
    %62 = vmatprep.subr.mxu0 0.0
    %63 = vmatpush1.msra.mxu0 0.0
    %64 = vmatprep.subr.mxu0 0.0
    %65 = vmatpush1.msra.mxu0 0.0
    %66 = vmatprep.subr.mxu0 0.0
    %67 = vmatpush1.msra.mxu0 0.0
    %68 = vmatprep.subr.mxu0 0.0
    %69 = vmatpush1.msra.mxu0 0.0
    %70 = vmatprep.subr.mxu0 0.0
    %71 = vmatpush1.msra.mxu0 0.0
    %72 = vmatprep.subr.mxu0 0.0
    %73 = vmatpush1.msra.mxu0 0.0
    %74 = vmatprep.subr.mxu0 0.0
    %75 = vmatpush1.msra.mxu0 0.0
    %76 = vmatprep.subr.mxu0 0.0
    %77 = vmatpush1.msra.mxu0 0.0
    %78 = vmatprep.subr.mxu0 0.0
    %79 = vmatpush1.msra.mxu0 0.0
    %80 = vmatprep.subr.mxu0 0.0
    %81 = vmatpush1.msra.mxu0 0.0
    %82 = vmatprep.subr.mxu0 0.0
    %83 = vmatpush1.msra.mxu0 0.0
    %84 = vmatprep.subr.mxu0 0.0
    %85 = vmatpush1.msra.mxu0 0.0
    %86 = vmatprep.subr.mxu0 0.0
    %87 = vmatpush1.msra.mxu0 0.0
    %88 = vmatprep.subr.mxu0 0.0
    %89 = vmatpush1.msra.mxu0 0.0
    %90 = vmatprep.subr.mxu0 0.0
    %91 = vmatpush1.msra.mxu0 0.0
    %92 = vmatprep.subr.mxu0 0.0
    %93 = vmatpush1.msra.mxu0 0.0
    %94 = vmatprep.mubr.f32.mxu0 0.0
    %95 = vmatmul.mubr.f32.gmra.mrb[0].mxu0 %v28
    %v96 = vpop.f32.mrb[0].mxu0
    %v97 = vadd.f32 0.0, %v96
    %v98 = vpop.f32.mrb[0].mxu0
    %99 = vdwg.mxu0
    %v100 = vld [vmem:[%s2] sm:$0x1]
    %v102 = vlaneseq
    %v103 = vshrl.u32 %v102, 7
    %v104 = vsub.s32 0, %v103
    %v105 = vrot.slane %v100, %v104
    %v107 = vadd.f32 %v97, %v105
    %v108 = vadd.f32 %v107, 3.0
    %v109 = vmax.f32 %v108, 0.0
    %v110 = vmin.f32 %v109, 6.0
    %v111 = vmul.f32 %v107, %v110
    %v112 = vmul.f32 %v111, 0.16666667
    %v113 = vld [vmem:[%s3] sm:$0xff]
    %v114 = vld [vmem:[%s3 + $0x8] sm:$0xff]
    %v115 = vld [vmem:[%s3 + $0x10] sm:$0xff]
    %v116 = vld [vmem:[%s3 + $0x18] sm:$0xff]
    %v118 = vsel %vm26, %v112, 0
    %120 = vmatprep.subr.mxu0 0.0
    %121 = vmatpush1.msra.mxu0 %v113
    %122 = vmatprep.subr.mxu0 0.0
    %123 = vmatpush1.msra.mxu0 %v114
    %124 = vmatprep.subr.mxu0 0.0
    %125 = vmatpush1.msra.mxu0 %v115
    %126 = vmatprep.subr.mxu0 0.0
    %127 = vmatpush1.msra.mxu0 %v116
    %128 = vmatprep.subr.mxu0 0.0
    %129 = vmatpush1.msra.mxu0 0.0
    %130 = vmatprep.subr.mxu0 0.0
    %131 = vmatpush1.msra.mxu0 0.0
    %132 = vmatprep.subr.mxu0 0.0
    %133 = vmatpush1.msra.mxu0 0.0
    %134 = vmatprep.subr.mxu0 0.0
    %135 = vmatpush1.msra.mxu0 0.0
    %136 = vmatprep.subr.mxu0 0.0
    %137 = vmatpush1.msra.mxu0 0.0
    %138 = vmatprep.subr.mxu0 0.0
    %139 = vmatpush1.msra.mxu0 0.0
    %140 = vmatprep.subr.mxu0 0.0
    %141 = vmatpush1.msra.mxu0 0.0
    %142 = vmatprep.subr.mxu0 0.0
    %143 = vmatpush1.msra.mxu0 0.0
    %144 = vmatprep.subr.mxu0 0.0
    %145 = vmatpush1.msra.mxu0 0.0
    %146 = vmatprep.subr.mxu0 0.0
    %147 = vmatpush1.msra.mxu0 0.0
    %148 = vmatprep.subr.mxu0 0.0
    %149 = vmatpush1.msra.mxu0 0.0
    %150 = vmatprep.subr.mxu0 0.0
    %151 = vmatpush1.msra.mxu0 0.0
    %152 = vmatprep.subr.mxu0 0.0
    %153 = vmatpush1.msra.mxu0 0.0
    %154 = vmatprep.subr.mxu0 0.0
    %155 = vmatpush1.msra.mxu0 0.0
    %156 = vmatprep.subr.mxu0 0.0
    %157 = vmatpush1.msra.mxu0 0.0
    %158 = vmatprep.subr.mxu0 0.0
    %159 = vmatpush1.msra.mxu0 0.0
    %160 = vmatprep.subr.mxu0 0.0
    %161 = vmatpush1.msra.mxu0 0.0
    %162 = vmatprep.subr.mxu0 0.0
    %163 = vmatpush1.msra.mxu0 0.0
    %164 = vmatprep.subr.mxu0 0.0
    %165 = vmatpush1.msra.mxu0 0.0
    %166 = vmatprep.subr.mxu0 0.0
    %167 = vmatpush1.msra.mxu0 0.0
    %168 = vmatprep.subr.mxu0 0.0
    %169 = vmatpush1.msra.mxu0 0.0
    %170 = vmatprep.subr.mxu0 0.0
    %171 = vmatpush1.msra.mxu0 0.0
    %172 = vmatprep.subr.mxu0 0.0
    %173 = vmatpush1.msra.mxu0 0.0
    %174 = vmatprep.subr.mxu0 0.0
    %175 = vmatpush1.msra.mxu0 0.0
    %176 = vmatprep.subr.mxu0 0.0
    %177 = vmatpush1.msra.mxu0 0.0
    %178 = vmatprep.subr.mxu0 0.0
    %179 = vmatpush1.msra.mxu0 0.0
    %180 = vmatprep.subr.mxu0 0.0
    %181 = vmatpush1.msra.mxu0 0.0
    %182 = vmatprep.subr.mxu0 0.0
    %183 = vmatpush1.msra.mxu0 0.0
    %184 = vmatprep.mubr.f32.mxu0 0.0
    %185 = vmatmul.mubr.f32.gmra.mrb[0].mxu0 %v118
    %v186 = vpop.f32.mrb[0].mxu0
    %v187 = vadd.f32 0.0, %v186
    %v188 = vpop.f32.mrb[0].mxu0
    %189 = vdwg.mxu0
    %191 = vrot.lane.b32.xlu0 %v187, 32
    %v192 = vpop.permute.xlu0 %191
    %v194 = vadd.f32 %v97, %v192
    %v195 = vld [vmem:[%s4] sm:$0x1]
    %v197 = vlaneseq
    %v198 = vshrl.u32 %v197, 7
    %v199 = vsub.s32 0, %v198
    %v200 = vrot.slane %v195, %v199
    %201 = vrot.lane.b32.xlu0 %v200, 32
    %v202 = vpop.permute.xlu0 %201
    %v204 = vadd.f32 %v194, %v202
    %v205 = vadd.f32 %v204, 3.0
    %v206 = vmax.f32 %v205, 0.0
    %v207 = vmin.f32 %v206, 6.0
    %v208 = vmul.f32 %v204, %v207
    %v209 = vmul.f32 %v208, 0.16666667
    %vm210 = vcmask 254976
    %211 = vst.msk [vmem:[#allocation2] sm:$0x3] %vm210, %v21
    %212 = vrot.lane.b32.xlu0 %v112, 32
    %v213 = vpop.permute.xlu0 %212
    %vm215 = vcmask 517376
    %216 = vst.msk [vmem:[#allocation2] sm:$0x3] %vm215, %v213
    %218 = vrot.lane.b32.xlu0 %v209, 32
    %v219 = vpop.permute.xlu0 %218
    %vm221 = vcmask 1041920
    %222 = vst.msk [vmem:[#allocation2] sm:$0x3] %vm221, %v219
    // Predicated region
    $region22: #{densenet_forward.1} parent=1 // pred_check
      _
    $region23: #{densenet_forward.1} parent=1 // pred_check_branch
      %224 = sbr.rel (0) target = $region25
    $region24: #{densenet_forward.1} parent=1 // pred_region
      %s226 = ssub.s32 32, 32
      %227 = vsyncadd [#allocation3], %s226
      %s229 = sshll.u32 [#allocation2], 4
      %s230 = int_to_ptr.vmem [resolvable:$true] %s229
      %232 = dma.vmem_to_hbm [thread:$0]  %s230, 32, %s5, [#allocation3]
    $region25: #{densenet_forward.1} parent=1 // pred_fallthru
      _
    // Predicated region
    $region26: #{densenet_forward.1} parent=1 // pred_check
      _
    $region27: #{densenet_forward.1} parent=1 // pred_check_branch
      %234 = sbr.rel (0) target = $region29
    $region28: #{densenet_forward.1} parent=1 // pred_region
      %235 = dma.done [#allocation3], 32
    $region29: #{densenet_forward.1} parent=1 // pred_fallthru
      _
    %236 = vsyncpa [#allocation3], 1

// kernel: densenet_forward.1
$region0: #{densenet_forward.1}
  #allocation0 [shape = 'u32[]', space=smem, size = 0x4, offset = 0x4, fixed_abs, tag = 'smem constant byte address 0x4 - core index']
  #allocation1 [shape = 'u32[144,128]{1,0:T(1,128)}', space=vmem, size = 0x12000, scoped, tag = 'internal scratch']
  %s0 = inlined_call_operand.vmem [shape: f32[2,32], index: 0, kind: input, shape index: {}]
  %s1 = inlined_call_operand.vmem [shape: f32[32,96], index: 1, kind: input, shape index: {}]
  %s2 = inlined_call_operand.vmem [shape: f32[1,32], index: 2, kind: input, shape index: {}]
  %s3 = inlined_call_operand.vmem [shape: f32[32,64], index: 3, kind: input, shape index: {}]
  %s4 = inlined_call_operand.vmem [shape: f32[1,64], index: 4, kind: input, shape index: {}]
  %s5 = inlined_call_operand.hbm [shape: f32[2,128], index: 5, kind: output, shape index: {}]
  %s6 = sld [smem:[#allocation0]]
  $region30: #{densenet_forward.1} parent=0
    _
  %s8 = ssub.s32 1, %s6
  %s9 = scalar_select 0, %s8, %s6
  $region1: #{densenet_forward.1} parent=0
    #allocation2 [shape = 'u8[1024]{0}', space=vmem, size = 0x400, scoped, tag = 'output window, operand 0, single buffered']
    #allocation3 [shape = 's32[1]{0}', space=sflag, size = 0x4, scoped, tag = 'scoped memory for densenet_forward.1']
    %10 = vsyncpa [#allocation3], 0
    // Predicated region
    $region2: #{densenet_forward.1} parent=1 // pred_check
      _
    $region3: #{densenet_forward.1} parent=1 // pred_check_branch
      %12 = sbr.rel (0) target = $region5
    $region4: #{densenet_forward.1} parent=1 // pred_region
      _
    $region5: #{densenet_forward.1} parent=1 // pred_fallthru
      _
    // Predicated region
    $region6: #{densenet_forward.1} parent=1 // pred_check
      _
    $region7: #{densenet_forward.1} parent=1 // pred_check_branch
      %14 = sbr.rel (0) target = $region9
    $region8: #{densenet_forward.1} parent=1 // pred_region
      _
    $region9: #{densenet_forward.1} parent=1 // pred_fallthru
      _
    // Predicated region
    $region10: #{densenet_forward.1} parent=1 // pred_check
      _
    $region11: #{densenet_forward.1} parent=1 // pred_check_branch
      %16 = sbr.rel (0) target = $region13
    $region12: #{densenet_forward.1} parent=1 // pred_region
      _
    $region13: #{densenet_forward.1} parent=1 // pred_fallthru
      _
    // Predicated region
    $region14: #{densenet_forward.1} parent=1 // pred_check
      _
    $region15: #{densenet_forward.1} parent=1 // pred_check_branch
      %18 = sbr.rel (0) target = $region17
    $region16: #{densenet_forward.1} parent=1 // pred_region
      _
    $region17: #{densenet_forward.1} parent=1 // pred_fallthru
      _
    // Predicated region
    $region18: #{densenet_forward.1} parent=1 // pred_check
      _
    $region19: #{densenet_forward.1} parent=1 // pred_check_branch
      %20 = sbr.rel (0) target = $region21
    $region20: #{densenet_forward.1} parent=1 // pred_region
      _
    $region21: #{densenet_forward.1} parent=1 // pred_fallthru
      _
    %v21 = vld [vmem:[%s0] sm:$0x3]
    %v22 = vld [vmem:[%s1] sm:$0xff]
    %v23 = vld [vmem:[%s1 + $0x8] sm:$0xff]
    %v24 = vld [vmem:[%s1 + $0x10] sm:$0xff]
    %v25 = vld [vmem:[%s1 + $0x18] sm:$0xff]
    %vm26 = vcmask 261120
    %v28 = vsel %vm26, %v21, 0
    %30 = vmatprep.subr.mxu0 0.0
    %31 = vmatpush1.msra.mxu0 %v22
    %32 = vmatprep.subr.mxu0 0.0
    %33 = vmatpush1.msra.mxu0 %v23
    %34 = vmatprep.subr.mxu0 0.0
    %35 = vmatpush1.msra.mxu0 %v24
    %36 = vmatprep.subr.mxu0 0.0
    %37 = vmatpush1.msra.mxu0 %v25
    %38 = vmatprep.subr.mxu0 0.0
    %39 = vmatpush1.msra.mxu0 0.0
    %40 = vmatprep.subr.mxu0 0.0
    %41 = vmatpush1.msra.mxu0 0.0
    %42 = vmatprep.subr.mxu0 0.0
    %43 = vmatpush1.msra.mxu0 0.0
    %44 = vmatprep.subr.mxu0 0.0
    %45 = vmatpush1.msra.mxu0 0.0
    %46 = vmatprep.subr.mxu0 0.0
    %47 = vmatpush1.msra.mxu0 0.0
    %48 = vmatprep.subr.mxu0 0.0
    %49 = vmatpush1.msra.mxu0 0.0
    %50 = vmatprep.subr.mxu0 0.0
    %51 = vmatpush1.msra.mxu0 0.0
    %52 = vmatprep.subr.mxu0 0.0
    %53 = vmatpush1.msra.mxu0 0.0
    %54 = vmatprep.subr.mxu0 0.0
    %55 = vmatpush1.msra.mxu0 0.0
    %56 = vmatprep.subr.mxu0 0.0
    %57 = vmatpush1.msra.mxu0 0.0
    %58 = vmatprep.subr.mxu0 0.0
    %59 = vmatpush1.msra.mxu0 0.0
    %60 = vmatprep.subr.mxu0 0.0
    %61 = vmatpush1.msra.mxu0 0.0
    %62 = vmatprep.subr.mxu0 0.0
    %63 = vmatpush1.msra.mxu0 0.0
    %64 = vmatprep.subr.mxu0 0.0
    %65 = vmatpush1.msra.mxu0 0.0
    %66 = vmatprep.subr.mxu0 0.0
    %67 = vmatpush1.msra.mxu0 0.0
    %68 = vmatprep.subr.mxu0 0.0
    %69 = vmatpush1.msra.mxu0 0.0
    %70 = vmatprep.subr.mxu0 0.0
    %71 = vmatpush1.msra.mxu0 0.0
    %72 = vmatprep.subr.mxu0 0.0
    %73 = vmatpush1.msra.mxu0 0.0
    %74 = vmatprep.subr.mxu0 0.0
    %75 = vmatpush1.msra.mxu0 0.0
    %76 = vmatprep.subr.mxu0 0.0
    %77 = vmatpush1.msra.mxu0 0.0
    %78 = vmatprep.subr.mxu0 0.0
    %79 = vmatpush1.msra.mxu0 0.0
    %80 = vmatprep.subr.mxu0 0.0
    %81 = vmatpush1.msra.mxu0 0.0
    %82 = vmatprep.subr.mxu0 0.0
    %83 = vmatpush1.msra.mxu0 0.0
    %84 = vmatprep.subr.mxu0 0.0
    %85 = vmatpush1.msra.mxu0 0.0
    %86 = vmatprep.subr.mxu0 0.0
    %87 = vmatpush1.msra.mxu0 0.0
    %88 = vmatprep.subr.mxu0 0.0
    %89 = vmatpush1.msra.mxu0 0.0
    %90 = vmatprep.subr.mxu0 0.0
    %91 = vmatpush1.msra.mxu0 0.0
    %92 = vmatprep.subr.mxu0 0.0
    %93 = vmatpush1.msra.mxu0 0.0
    %94 = vmatprep.mubr.f32.mxu0 0.0
    %95 = vmatmul.mubr.f32.gmra.mrb[0].mxu0 %v28
    %v96 = vpop.f32.mrb[0].mxu0
    %v97 = vadd.f32 0.0, %v96
    %v98 = vpop.f32.mrb[0].mxu0
    %99 = vdwg.mxu0
    %v100 = vld [vmem:[%s2] sm:$0x1]
    %v102 = vlaneseq
    %v103 = vshrl.u32 %v102, 7
    %v104 = vsub.s32 0, %v103
    %v105 = vrot.slane %v100, %v104
    %v107 = vadd.f32 %v97, %v105
    %v108 = vadd.f32 %v107, 3.0
    %v109 = vmax.f32 %v108, 0.0
    %v110 = vmin.f32 %v109, 6.0
    %v111 = vmul.f32 %v107, %v110
    %v112 = vmul.f32 %v111, 0.16666667
    %v113 = vld [vmem:[%s3] sm:$0xff]
    %v114 = vld [vmem:[%s3 + $0x8] sm:$0xff]
    %v115 = vld [vmem:[%s3 + $0x10] sm:$0xff]
    %v116 = vld [vmem:[%s3 + $0x18] sm:$0xff]
    %v118 = vsel %vm26, %v112, 0
    %120 = vmatprep.subr.mxu0 0.0
    %121 = vmatpush1.msra.mxu0 %v113
    %122 = vmatprep.subr.mxu0 0.0
    %123 = vmatpush1.msra.mxu0 %v114
    %124 = vmatprep.subr.mxu0 0.0
    %125 = vmatpush1.msra.mxu0 %v115
    %126 = vmatprep.subr.mxu0 0.0
    %127 = vmatpush1.msra.mxu0 %v116
    %128 = vmatprep.subr.mxu0 0.0
    %129 = vmatpush1.msra.mxu0 0.0
    %130 = vmatprep.subr.mxu0 0.0
    %131 = vmatpush1.msra.mxu0 0.0
    %132 = vmatprep.subr.mxu0 0.0
    %133 = vmatpush1.msra.mxu0 0.0
    %134 = vmatprep.subr.mxu0 0.0
    %135 = vmatpush1.msra.mxu0 0.0
    %136 = vmatprep.subr.mxu0 0.0
    %137 = vmatpush1.msra.mxu0 0.0
    %138 = vmatprep.subr.mxu0 0.0
    %139 = vmatpush1.msra.mxu0 0.0
    %140 = vmatprep.subr.mxu0 0.0
    %141 = vmatpush1.msra.mxu0 0.0
    %142 = vmatprep.subr.mxu0 0.0
    %143 = vmatpush1.msra.mxu0 0.0
    %144 = vmatprep.subr.mxu0 0.0
    %145 = vmatpush1.msra.mxu0 0.0
    %146 = vmatprep.subr.mxu0 0.0
    %147 = vmatpush1.msra.mxu0 0.0
    %148 = vmatprep.subr.mxu0 0.0
    %149 = vmatpush1.msra.mxu0 0.0
    %150 = vmatprep.subr.mxu0 0.0
    %151 = vmatpush1.msra.mxu0 0.0
    %152 = vmatprep.subr.mxu0 0.0
    %153 = vmatpush1.msra.mxu0 0.0
    %154 = vmatprep.subr.mxu0 0.0
    %155 = vmatpush1.msra.mxu0 0.0
    %156 = vmatprep.subr.mxu0 0.0
    %157 = vmatpush1.msra.mxu0 0.0
    %158 = vmatprep.subr.mxu0 0.0
    %159 = vmatpush1.msra.mxu0 0.0
    %160 = vmatprep.subr.mxu0 0.0
    %161 = vmatpush1.msra.mxu0 0.0
    %162 = vmatprep.subr.mxu0 0.0
    %163 = vmatpush1.msra.mxu0 0.0
    %164 = vmatprep.subr.mxu0 0.0
    %165 = vmatpush1.msra.mxu0 0.0
    %166 = vmatprep.subr.mxu0 0.0
    %167 = vmatpush1.msra.mxu0 0.0
    %168 = vmatprep.subr.mxu0 0.0
    %169 = vmatpush1.msra.mxu0 0.0
    %170 = vmatprep.subr.mxu0 0.0
    %171 = vmatpush1.msra.mxu0 0.0
    %172 = vmatprep.subr.mxu0 0.0
    %173 = vmatpush1.msra.mxu0 0.0
    %174 = vmatprep.subr.mxu0 0.0
    %175 = vmatpush1.msra.mxu0 0.0
    %176 = vmatprep.subr.mxu0 0.0
    %177 = vmatpush1.msra.mxu0 0.0
    %178 = vmatprep.subr.mxu0 0.0
    %179 = vmatpush1.msra.mxu0 0.0
    %180 = vmatprep.subr.mxu0 0.0
    %181 = vmatpush1.msra.mxu0 0.0
    %182 = vmatprep.subr.mxu0 0.0
    %183 = vmatpush1.msra.mxu0 0.0
    %184 = vmatprep.mubr.f32.mxu0 0.0
    %185 = vmatmul.mubr.f32.gmra.mrb[0].mxu0 %v118
    %v186 = vpop.f32.mrb[0].mxu0
    %v187 = vadd.f32 0.0, %v186
    %v188 = vpop.f32.mrb[0].mxu0
    %189 = vdwg.mxu0
    %191 = vrot.lane.b32.xlu0 %v187, 32
    %v192 = vpop.permute.xlu0 %191
    %v194 = vadd.f32 %v97, %v192
    %v195 = vld [vmem:[%s4] sm:$0x1]
    %v197 = vlaneseq
    %v198 = vshrl.u32 %v197, 7
    %v199 = vsub.s32 0, %v198
    %v200 = vrot.slane %v195, %v199
    %201 = vrot.lane.b32.xlu0 %v200, 32
    %v202 = vpop.permute.xlu0 %201
    %v204 = vadd.f32 %v194, %v202
    %v205 = vadd.f32 %v204, 3.0
    %v206 = vmax.f32 %v205, 0.0
    %v207 = vmin.f32 %v206, 6.0
    %v208 = vmul.f32 %v204, %v207
    %v209 = vmul.f32 %v208, 0.16666667
    %vm210 = vcmask 254976
    %211 = vst.msk [vmem:[#allocation2] sm:$0x3] %vm210, %v21
    %212 = vrot.lane.b32.xlu0 %v112, 32
    %v213 = vpop.permute.xlu0 %212
    %vm215 = vcmask 517376
    %216 = vst.msk [vmem:[#allocation2] sm:$0x3] %vm215, %v213
    %218 = vrot.lane.b32.xlu0 %v209, 32
    %v219 = vpop.permute.xlu0 %218
    %vm221 = vcmask 1041920
    %222 = vst.msk [vmem:[#allocation2] sm:$0x3] %vm221, %v219
    // Predicated region
    $region22: #{densenet_forward.1} parent=1 // pred_check
      _
    $region23: #{densenet_forward.1} parent=1 // pred_check_branch
      %224 = sbr.rel (0) target = $region25
    $region24: #{densenet_forward.1} parent=1 // pred_region
      %s226 = ssub.s32 32, 32
      %227 = vsyncadd [#allocation3], %s226
      %s229 = sshll.u32 [#allocation2], 4
      %s230 = int_to_ptr.vmem [resolvable:$true] %s229
      %232 = dma.vmem_to_hbm [thread:$0]  %s230, 32, %s5, [#allocation3]
    $region25: #{densenet_forward.1} parent=1 // pred_fallthru
      _
    // Predicated region
    $region26: #{densenet_forward.1} parent=1 // pred_check
      _
    $region27: #{densenet_forward.1} parent=1 // pred_check_branch
      %234 = sbr.rel (0) target = $region29
    $region28: #{densenet_forward.1} parent=1 // pred_region
      %235 = dma.done [#allocation3], 32
    $region29: #{densenet_forward.1} parent=1 // pred_fallthru
      _
    %236 = vsyncpa [#allocation3], 1

</llo_original>
